<compile_context>
chip_gen: v7x
topology: tpu7x:2x2x1
jax: 0.10.0
libtpu: 0.0.40
codegen_flags: <defaults>
</compile_context>

<pallas_src>
import functools

import jax
import jax.numpy as jnp
from jax.experimental import pallas as pl
from jax.experimental.pallas import tpu as pltpu

_MIB = 1024 * 1024

# >= 4 total grid steps: both v7x TensorCores (all grid axes are "parallel") get
# work AND the BlockSpec pipeline has >= 2 steps per core.  Per-step cost is
# only ~0.35 us, so this is harmless on single-TensorCore v5e/v6e.
_MIN_TOTAL_GRID_STEPS = 4


def _prod(xs):
    r = 1
    for v in xs:
        r *= int(v)
    return r


def _sublane_quantum(dtype):
    """Sublane quantum: 8 for 32-bit, 16 for bf16/f16, 32 for int8/fp8."""
    return {4: 8, 2: 16, 1: 32}.get(jnp.dtype(dtype).itemsize, 8)


def _budgets():
    """(max_block_bytes, vmem_limit_bytes) derived from the actual chip.

    v4/v5e/v6e (128 MiB physical VMEM): 8 MiB blocks / 80 MiB scoped limit --
    tiled copies only reach ~85% of HBM roofline at >= 2-4 MiB blocks, and the
    explicit limit matters most on v5e whose scoped default is small.
    v7x (64 MiB physical): keep 4 MiB blocks / <= 48 MiB scoped -- double
    buffered in+out plus the transposed intermediate must leave headroom; its
    3.2 TB/s HBM means it needs headroom, not tile size.
    """
    vmem = None
    try:
        info = pltpu.get_tpu_info()
        for name in ("vmem_capacity_bytes", "vmem_size_bytes", "vmem_bytes"):
            v = getattr(info, name, None)
            if v:
                vmem = int(v)
                break
    except Exception:
        vmem = None
    if vmem is None:
        return 4 * _MIB, 40 * _MIB            # conservative: safe on v5e/v6e/v7x
    if vmem >= 100 * _MIB:                     # v4 / v5e / v6e class (128 MiB)
        return 8 * _MIB, 80 * _MIB
    limit = min(48 * _MIB, max(16 * _MIB, (vmem * 3) // 4))   # v7x class
    return max(2 * _MIB, limit // 10), limit


def _fits_vmem(double_buffered, singles, vmem_limit):
    """Rough accounting: pipelined blocks count twice (double buffering), plus
    single-buffered in-kernel intermediates, against ~90% of the scoped limit."""
    need = 2 * sum(double_buffered) + sum(singles)
    return need <= (9 * vmem_limit) // 10


def _pick_tile(dim, row_bytes, quantum, max_block_bytes,
               other_steps=1, min_total_steps=_MIN_TOTAL_GRID_STEPS):
    """Pick a tile t with (t == dim) or (t % quantum == 0 and dim % t == 0).

    Among tiles whose block fits `max_block_bytes`, prefer the largest one that
    still yields other_steps * (dim // t) >= min_total_steps (v7x 2-TC sharding
    + pipelining); otherwise take the largest fitting tile.
    """
    cands = [d for d in range(quantum, dim + 1, quantum) if dim % d == 0]
    if dim not in cands:
        cands.append(dim)
    fitting = [t for t in cands if t * row_bytes <= max_block_bytes]
    if not fitting:
        fitting = [min(cands)]
    good = [t for t in fitting if other_steps * (dim // t) >= min_total_steps]
    return max(good) if good else max(fitting)


# ---------------------------------------------------------------------------
# Kernels
# ---------------------------------------------------------------------------

def _copy_kernel(x_ref, o_ref):
    # Pure-copy body: the permutation lives entirely in the BlockSpec
    # index_maps, so this is a DMA relayout with no VPU/XLU work.
    o_ref[...] = x_ref[...]


def _transpose_kernel(x_ref, o_ref, *, perm):
    o_ref[...] = jnp.transpose(x_ref[...], perm)


def _nchw_collapsed_kernel(x_ref, o_ref):
    # x_ref: (C, tile_h, W) -> (tile_h, W, C) via XLU, then collapse the
    # contiguous (W, C) run into W*C lanes so stores are unmasked `vst`
    # (lane-dense output is the biggest measured store-side lever).
    # TODO(synk): fuse transpose+reshape via pltpu.einshape and, for bf16/int8
    # with even C, pltpu.bitcast-pack along C to cut the XLU element count.
    t = jnp.transpose(x_ref[...], (1, 2, 0))
    o_ref[...] = t.reshape(o_ref.shape)


# ---------------------------------------------------------------------------
# Dispatch paths
# ---------------------------------------------------------------------------

def _nchw_to_nhwc(x, max_block, vmem_limit):
    """Permute(0, 2, 3, 1): NCHW -> NHWC (the module's instantiation)."""
    N, C, H, W = x.shape
    item = jnp.dtype(x.dtype).itemsize
    q = _sublane_quantum(x.dtype)

    # Path A: collapsed lane-dense store.  Statically gated (no try/except) on
    # the collapsed lane width being a clean multiple of 128 -> unmasked vst and
    # a regular in-kernel relayout.
    if (W * C) % 128 == 0:
        tile_h = _pick_tile(H, C * W * item, q, max_block, other_steps=N)
        blk = tile_h * W * C * item
        if H % tile_h == 0 and _fits_vmem([blk, blk], [blk], vmem_limit):
            out = pl.pallas_call(
                _nchw_collapsed_kernel,
                out_shape=jax.ShapeDtypeStruct((N, H, W * C), x.dtype),
                grid_spec=pltpu.PrefetchScalarGridSpec(
                    num_scalar_prefetch=0,
                    grid=(N, H // tile_h),
                    in_specs=[pl.BlockSpec((None, C, tile_h, W),
                                           lambda b, h: (b, 0, h, 0))],
                    out_specs=pl.BlockSpec((None, tile_h, W * C),
                                           lambda b, h: (b, h, 0)),
                ),
                compiler_params=pltpu.CompilerParams(
                    dimension_semantics=("parallel", "parallel"),
                    vmem_limit_bytes=vmem_limit,
                ),
            )(x)
            return out.reshape(N, H, W, C)      # metadata-only split of (W*C)

    # Path B: batched 2D transpose over the lane-dense (C, H*W) view.  The
    # wrapper-side reshape is metadata-only for contiguous NCHW; input loads are
    # lane-dense (W alone is usually << 128) and the body is a plain minor-2D
    # transpose with no in-kernel reshape.
    HW = H * W
    tile_hw = _pick_tile(HW, C * item, 128, max_block, other_steps=N)
    blk = tile_hw * C * item
    if HW % tile_hw != 0 or not _fits_vmem([blk, blk], [], vmem_limit):
        # TODO(synk): in-kernel 128x128 sub-tiling when even one lane-aligned
        # row strip exceeds the per-block budget.
        return jnp.transpose(x, (0, 2, 3, 1))
    out2 = pl.pallas_call(
        functools.partial(_transpose_kernel, perm=(1, 0)),
        out_shape=jax.ShapeDtypeStruct((N, HW, C), x.dtype),
        grid_spec=pltpu.PrefetchScalarGridSpec(
            num_scalar_prefetch=0,
            grid=(N, HW // tile_hw),
            in_specs=[pl.BlockSpec((None, C, tile_hw), lambda b, t: (b, 0, t))],
            out_specs=pl.BlockSpec((None, tile_hw, C), lambda b, t: (b, t, 0)),
        ),
        compiler_params=pltpu.CompilerParams(
            dimension_semantics=("parallel", "parallel"),
            vmem_limit_bytes=vmem_limit,
        ),
    )(x.reshape(N, C, HW))
    return out2.reshape(N, H, W, C)


def _leading_axes_permute(x, dims, max_block, vmem_limit):
    """dims leaves (at least) the last two axes untouched: pure-copy kernel.

    The whole trailing run of unmoved axes is folded (metadata-only reshape)
    into one lane-dense last dim D' -- bigger, denser DMAs and fewer grid steps
    -- while one unmoved axis R' is kept in front of it for sublane tiling.
    """
    n = x.ndim
    item = jnp.dtype(x.dtype).itemsize
    q = _sublane_quantum(x.dtype)

    L = 0                                      # length of the unmoved suffix (>= 2)
    while L < n and dims[n - 1 - L] == n - 1 - L:
        L += 1

    # Fold trailing unmoved axes into D' while a quantum-row tile still fits.
    f = 1
    while f < L - 1 and q * _prod(x.shape[n - (f + 1):]) * item <= max_block:
        f += 1
    m = n - f - 1                              # leading (gridded) axes
    Rp = x.shape[m]
    Dp = _prod(x.shape[m + 1:])
    lead_dims = dims[:m]                       # permutation of range(m)

    other_steps = _prod(x.shape[d] for d in lead_dims)
    tile_r = _pick_tile(Rp, Dp * item, q, max_block, other_steps=other_steps)
    blk = tile_r * Dp * item
    if Rp % tile_r != 0 or not _fits_vmem([blk, blk], [], vmem_limit):
        return jnp.transpose(x, dims)

    xz = x.reshape(x.shape[:m] + (Rp, Dp))     # metadata-only fold
    block = (1,) * m + (tile_r, Dp)
    grid = tuple(x.shape[d] for d in lead_dims) + (Rp // tile_r,)
    pos_of_in_axis = {a: j for j, a in enumerate(lead_dims)}

    def in_index(*g):
        return tuple(g[pos_of_in_axis[a]] for a in range(m)) + (g[-1], 0)

    def out_index(*g):
        return tuple(g[:m]) + (g[-1], 0)

    # TODO(synk): pipeline_mode=pl.Buffered(3) (or direct HBM->HBM DMAs on v5e)
    # when blocks are tiny and the 0.35us/step overhead dominates.
    out = pl.pallas_call(
        _copy_kernel,
        out_shape=jax.ShapeDtypeStruct(
            tuple(x.shape[d] for d in lead_dims) + (Rp, Dp), x.dtype),
        grid_spec=pltpu.PrefetchScalarGridSpec(
            num_scalar_prefetch=0,
            grid=grid,
            in_specs=[pl.BlockSpec(block, in_index)],
            out_specs=pl.BlockSpec(block, out_index),
        ),
        compiler_params=pltpu.CompilerParams(
            dimension_semantics=("parallel",) * len(grid),
            vmem_limit_bytes=vmem_limit,
        ),
    )(xz)
    return out.reshape(tuple(x.shape[d] for d in dims))


def _generic_permute(x, dims, max_block, vmem_limit):
    """Gridded generic fallback: grid over axes that are leading in BOTH the
    input and the output; axes touching either minor-2D stay at full extent so
    the (8, 128) rule is met via the full-dim exception.  Guarded by a VMEM
    budget check so over-sized full-extent blocks never reach the compiler."""
    n = x.ndim
    item = jnp.dtype(x.dtype).itemsize
    out_shape = tuple(x.shape[d] for d in dims)
    full_axes = {n - 2, n - 1, dims[n - 2], dims[n - 1]}
    gridded_out_pos = [j for j in range(n - 2) if dims[j] not in full_axes]

    in_block = tuple(x.shape[i] if i in full_axes else 1 for i in range(n))
    out_block = tuple(out_shape[j] if dims[j] in full_axes else 1 for j in range(n))
    blk_in = _prod(in_block) * item
    blk_out = _prod(out_block) * item
    if not _fits_vmem([blk_in, blk_out], [max(blk_in, blk_out)], vmem_limit):
        # TODO(synk): in-kernel 128x(k*128) sub-tiling of the minor-2D transpose
        # (and a lane-dense collapsed out_spec) instead of an XLA fallback.
        return jnp.transpose(x, dims)

    grid = tuple(out_shape[j] for j in gridded_out_pos) or (1,)
    grid_pos_of_out_pos = {j: k for k, j in enumerate(gridded_out_pos)}
    grid_pos_of_in_axis = {dims[j]: k for k, j in enumerate(gridded_out_pos)}

    def in_index(*g):
        return tuple(g[grid_pos_of_in_axis[i]] if i in grid_pos_of_in_axis else 0
                     for i in range(n))

    def out_index(*g):
        return tuple(g[grid_pos_of_out_pos[j]] if j in grid_pos_of_out_pos else 0
                     for j in range(n))

    return pl.pallas_call(
        functools.partial(_transpose_kernel, perm=dims),
        out_shape=jax.ShapeDtypeStruct(out_shape, x.dtype),
        grid_spec=pltpu.PrefetchScalarGridSpec(
            num_scalar_prefetch=0,
            grid=grid,
            in_specs=[pl.BlockSpec(in_block, in_index)],
            out_specs=pl.BlockSpec(out_block, out_index),
        ),
        compiler_params=pltpu.CompilerParams(
            dimension_semantics=("parallel",) * len(grid),
            vmem_limit_bytes=vmem_limit,
        ),
    )(x)


def pallas_permute(x, dims):
    """Equivalent of `x.permute(*dims)` (PyTorch) via Pallas TPU kernels."""
    n = x.ndim
    dims = tuple(int(d) % n for d in dims)
    assert sorted(dims) == list(range(n)), "dims must be a permutation of the axes"

    if dims == tuple(range(n)):
        return x                                         # identity (view-equivalent)

    max_block, vmem_limit = _budgets()

    if n == 4 and dims == (0, 2, 3, 1):                  # NCHW -> NHWC (module's use)
        return _nchw_to_nhwc(x, max_block, vmem_limit)

    if n >= 3 and dims[-2:] == (n - 2, n - 1):           # only leading axes move
        return _leading_axes_permute(x, dims, max_block, vmem_limit)

    return _generic_permute(x, dims, max_block, vmem_limit)


class Permute:
    """Mirror of the PyTorch nn.Module (no parameters)."""

    def __init__(self, *dims):
        self.dims = dims

    def __call__(self, x):
        return pallas_permute(x, self.dims)


if __name__ == "__main__":
    key = jax.random.PRNGKey(0)
    # NCHW input, small shapes: batch=2, channels=4, spatial=16x16.
    x = jax.random.normal(key, (2, 4, 16, 16), dtype=jnp.float32)

    # Module's instantiation: NCHW -> NHWC (lane-dense-input 2D transpose path).
    module = Permute(0, 2, 3, 1)
    out = jax.block_until_ready(module(x))
    ref = jnp.transpose(x, (0, 2, 3, 1))
    assert out.shape == (2, 16, 16, 4), out.shape
    assert out.dtype == x.dtype
    assert jnp.array_equal(out, ref), "mismatch vs reference transpose (0,2,3,1)"

    # Leading-axis permutation -> pure index_map copy path (folded suffix).
    out_b = jax.block_until_ready(Permute(1, 0, 2, 3)(x))
    assert jnp.array_equal(out_b, jnp.transpose(x, (1, 0, 2, 3)))

    # Permutation that scrambles the minor axes -> gridded generic fallback.
    out_c = jax.block_until_ready(Permute(3, 0, 2, 1)(x))
    assert jnp.array_equal(out_c, jnp.transpose(x, (3, 0, 2, 1)))

    # bf16 exercises the dtype-dependent sublane quantum in the tile selection.
    xb = x.astype(jnp.bfloat16)
    out_d = jax.block_until_ready(Permute(0, 2, 3, 1)(xb))
    assert jnp.array_equal(out_d, jnp.transpose(xb, (0, 2, 3, 1)))

    # Identity permutation is a no-op, like the PyTorch view.
    assert Permute(0, 1, 2, 3)(x) is x

    print("KERNEL_OK")
</pallas_src>

<mosaic_0001>
module attributes {stable_mosaic.version = 11 : i64} {
  func.func @_transpose_kernel(%arg0: i32, %arg1: i32, %arg2: memref<1x4x128xf32, #tpu.memory_space<vmem>>, %arg3: memref<1x128x4xf32, #tpu.memory_space<vmem>>) attributes {dimension_semantics = [#tpu.dimension_semantics<parallel>, #tpu.dimension_semantics<parallel>], iteration_bounds = array<i64: 2, 2>, scalar_prefetch = 0 : i64, scratch_operands = 0 : i64, tpu.core_type = #tpu.core_type<tc>, window_params = [{transform_indices = @transform_0, window_bounds = array<i64: 1, 4, 128>}, {transform_indices = @transform_1, window_bounds = array<i64: 1, 128, 4>}]} {
    %c0 = arith.constant 0 : index
    %c0_0 = arith.constant 0 : index
    %c0_1 = arith.constant 0 : index
    %0 = vector.load %arg2[%c0, %c0_0, %c0_1] : memref<1x4x128xf32, #tpu.memory_space<vmem>>, vector<1x4x128xf32>
    %1 = vector.shape_cast %0 : vector<1x4x128xf32> to vector<4x128xf32>
    %2 = tpu.transpose %1, [1, 0] : vector<4x128xf32> -> vector<128x4xf32>
    %c0_2 = arith.constant 0 : index
    %c0_3 = arith.constant 0 : index
    %c0_4 = arith.constant 0 : index
    %3 = vector.load %arg3[%c0_2, %c0_3, %c0_4] : memref<1x128x4xf32, #tpu.memory_space<vmem>>, vector<1x128x4xf32>
    %4 = vector.shape_cast %3 : vector<1x128x4xf32> to vector<128x4xf32>
    %5 = vector.shape_cast %2 : vector<128x4xf32> to vector<1x128x4xf32>
    tpu.vector_store %arg3[%c0_2, %c0_3, %c0_4], %5 {strides = array<i32>} : memref<1x128x4xf32, #tpu.memory_space<vmem>>, vector<1x128x4xf32>,
    return
  }
  func.func @transform_0(%arg0: i32, %arg1: i32) -> (i32, i32, i32) {
    %c0_i32 = arith.constant 0 : i32
    %c0_i32_0 = arith.constant 0 : i32
    return %arg0, %c0_i32, %arg1 : i32, i32, i32
  }
  func.func @transform_1(%arg0: i32, %arg1: i32) -> (i32, i32, i32) {
    %c0_i32 = arith.constant 0 : i32
    %c0_i32_0 = arith.constant 0 : i32
    return %arg0, %arg1, %c0_i32 : i32, i32, i32
  }
}

</mosaic_0001>

<llo_original>
// kernel: tpu_custom_call.1
$region0: #{tpu_custom_call.1}
  #allocation0 [shape = 'u32[]', space=smem, size = 0x4, offset = 0x4, fixed_abs, tag = 'smem constant byte address 0x4 - core index']
  #allocation1 [shape = 'u32[144,128]{1,0:T(1,128)}', space=vmem, size = 0x12000, scoped, tag = 'internal scratch']
  %s0 = inlined_call_operand.hbm [shape: f32[2,4,256], index: 0, kind: input, shape index: {}]
  %s1 = inlined_call_operand.vmem [shape: f32[2,256,4], index: 1, kind: output, shape index: {}]
  %s2 = sld [smem:[#allocation0]]
  $region41: #{tpu_custom_call.1} parent=0
    _
  %s4 = ssub.s32 1, %s2
  %s5 = scalar_select 0, %s4, %s2
  $region1: #{tpu_custom_call.1} parent=0
    #allocation2 [shape = 'u8[4096]{0}', space=vmem, size = 0x1000, scoped, tag = 'input window, operand 0']
    #allocation3 [shape = 's32[2]{0}', space=sflag, size = 0x8, scoped, tag = 'scoped memory for tpu_custom_call.1']
    %6 = vsyncpa [#allocation3], 0
    %s7 = scalar_lea.sflag [#allocation3], 1
    %8 = vsyncpa %s7, 0
    loop: start=0, step=1, limit=6
    $region2: #{tpu_custom_call.1} parent=1 // loop_pre_header
      _
    $region3: #{tpu_custom_call.1} parent=1 // loop_header
      %s10 = sphi 0, %s14
      %p11 = scmp.ge.s32.totalorder %s10, 6
      %s17 = sphi 0, %s29
      %s18 = sphi 0, %s25
      %s19 = sphi 0, %s17
      %s20 = sphi 0, %s18
      %s21 = sphi 0, %s19
      %s22 = sphi 0, %s20
      %s34 = sphi 0, %s36
      %s37 = sphi 0, %s34
      %s38 = sphi 0, %s37
      %s54 = sphi 0, %s38
      %s62 = sphi 0, %s64
      %s65 = sphi 0, %s62
      %s66 = sphi 0, %s65
      %s82 = sphi 0, %s66
    $region4: #{tpu_custom_call.1} parent=1 // loop_header_branch
      %13 = sbr.rel (%p11) target = $region8
    $region5: #{tpu_custom_call.1} parent=1 // loop_body
      %s15 = ssub.s32 %s10, 1
      %s16 = ssub.s32 %s10, 2
      %s23 = sadd.s32 1, %s18
      %p24 = scmp.ge.s32.totalorder %s23, 2
      %s25 = scalar_select %p24, 0, %s23
      %s26 = sadd.s32 1, %s17
      %s27 = scalar_select %p24, %s26, %s17
      %p28 = scmp.ge.s32.totalorder %s27, 2
      %s29 = scalar_select %p28, 0, %s27
      %s30 = ssub.s32 %s17, %s29
      %s31 = ssub.s32 %s18, %s25
      %s32 = sor.u32 %s30, %s31
      %p33 = scmp.eq.s32.totalorder %s32, 0
      %s35 = sadd.s32 %s34, 1
      %s36 = scalar_select %p33, %s34, %s35
      %p39 = pneg %p33
      %p40 = scmp.eq.s32.totalorder %s10, 3
      %p41 = por %p39, %p40
      %p42 = scmp.ne.s32.totalorder %s34, %s37
      %p43 = scmp.eq.s32.totalorder %s10, 0
      %p44 = por %p42, %p43
      %p45 = scmp.ne.s32.totalorder %s34, %s37
      %p46 = scmp.eq.s32.totalorder %s15, 3
      %p47 = por %p45, %p46
      %p48 = scmp.ne.s32.totalorder %s37, %s38
      %p49 = scmp.eq.s32.totalorder %s15, 0
      %p50 = por %p48, %p49
      %p51 = scmp.ne.s32.totalorder %s37, %s38
      %p52 = scmp.eq.s32.totalorder %s16, 3
      %p53 = por %p51, %p52
      %p55 = scmp.ne.s32.totalorder %s38, %s54
      %p56 = scmp.eq.s32.totalorder %s16, 0
      %p57 = por %p55, %p56
      %s58 = ssub.s32 %s17, %s29
      %s59 = ssub.s32 %s18, %s25
      %s60 = sor.u32 %s58, %s59
      %p61 = scmp.eq.s32.totalorder %s60, 0
      %s63 = sadd.s32 %s62, 1
      %s64 = scalar_select %p61, %s62, %s63
      %p67 = pneg %p61
      %p68 = scmp.eq.s32.totalorder %s10, 3
      %p69 = por %p67, %p68
      %p70 = scmp.ne.s32.totalorder %s62, %s65
      %p71 = scmp.eq.s32.totalorder %s10, 0
      %p72 = por %p70, %p71
      %p73 = scmp.ne.s32.totalorder %s62, %s65
      %p74 = scmp.eq.s32.totalorder %s15, 3
      %p75 = por %p73, %p74
      %p76 = scmp.ne.s32.totalorder %s65, %s66
      %p77 = scmp.eq.s32.totalorder %s15, 0
      %p78 = por %p76, %p77
      %p79 = scmp.ne.s32.totalorder %s65, %s66
      %p80 = scmp.eq.s32.totalorder %s16, 3
      %p81 = por %p79, %p80
      %p83 = scmp.ne.s32.totalorder %s66, %s82
      %p84 = scmp.eq.s32.totalorder %s16, 0
      %p85 = por %p83, %p84
      %p86 = scmp.le.s32.totalorder 1, %s10
      %p87 = scmp.lt.s32.totalorder %s10, 5
      %p88 = pnand %p86, %p87
      %p89 = pneg %p88
      // Predicated region
      $region9: #{tpu_custom_call.1} parent=5 // pred_check
        _
      $region10: #{tpu_custom_call.1} parent=5 // pred_check_branch
        %91 = sbr.rel (%p88) target = $region12
      $region11: #{tpu_custom_call.1} parent=5 // pred_region
        %s92 = ssub.s32 %s10, 1
      $region12: #{tpu_custom_call.1} parent=5 // pred_fallthru
        _
      %p93 = scmp.lt.s32.totalorder %s10, 4
      // Predicated region
      $region13: #{tpu_custom_call.1} parent=5 // pred_check
        %p94 = pneg %p93
      $region14: #{tpu_custom_call.1} parent=5 // pred_check_branch
        %96 = sbr.rel (%p94) target = $region16
      $region15: #{tpu_custom_call.1} parent=5 // pred_region
        // Predicated region
        $region17: #{tpu_custom_call.1} parent=15 // pred_check
          %p97 = pneg %p44
        $region18: #{tpu_custom_call.1} parent=15 // pred_check_branch
          %99 = sbr.rel (%p97) target = $region20
        $region19: #{tpu_custom_call.1} parent=15 // pred_region
          %s100 = sand.u32 %s34, 1
          %s101 = scalar_lea.sflag [#allocation3], %s100
          %s102 = sand.u32 %s34, 1
          %s103 = smul.addr %s102, 4
          %s104 = scalar_lea.vmem [#allocation2], %s103
          %s106 = ssub.s32 64, 64
          %107 = vsyncadd %s101, %s106
          %s108 = smul.addr %s17, 2
          %s109 = sadd.s32 %s18, %s108
          %s110 = smul.addr %s109, 64
          %s111 = scalar_lea.hbm %s0, %s110
          %s113 = sshll.u32 %s104, 4
          %s114 = int_to_ptr.vmem [resolvable:$true] %s113
          %116 = dma.hbm_to_vmem [thread:$0]  %s111, 64, %s114, %s101
        $region20: #{tpu_custom_call.1} parent=15 // pred_fallthru
          _
      $region16: #{tpu_custom_call.1} parent=5 // pred_fallthru
        _
      %p117 = scmp.le.s32.totalorder 1, %s10
      %p118 = scmp.lt.s32.totalorder %s10, 5
      %p119 = pnand %p117, %p118
      %p120 = pneg %p119
      // Predicated region
      $region21: #{tpu_custom_call.1} parent=5 // pred_check
        _
      $region22: #{tpu_custom_call.1} parent=5 // pred_check_branch
        %122 = sbr.rel (%p119) target = $region24
      $region23: #{tpu_custom_call.1} parent=5 // pred_region
        %s123 = ssub.s32 %s10, 1
        %s124 = sand.u32 %s37, 1
        %s125 = scalar_lea.sflag [#allocation3], %s124
        %s126 = sand.u32 %s37, 1
        %s127 = smul.addr %s126, 4
        %s128 = scalar_lea.vmem [#allocation2], %s127
        // Predicated region
        $region25: #{tpu_custom_call.1} parent=23 // pred_check
          %p129 = pneg %p50
        $region26: #{tpu_custom_call.1} parent=23 // pred_check_branch
          %131 = sbr.rel (%p129) target = $region28
        $region27: #{tpu_custom_call.1} parent=23 // pred_region
          %132 = dma.done %s125, 64
        $region28: #{tpu_custom_call.1} parent=23 // pred_fallthru
          _
        %s133 = sand.u32 %s37, 1
        %s134 = scalar_lea.sflag [#allocation3], %s133
        %s135 = sand.u32 %s37, 1
        %s136 = smul.addr %s135, 4
        %s137 = scalar_lea.vmem [#allocation2], %s136
        %p138 = pneg %p50
        %p139 = pneg %p47
        %p140 = pneg %p78
        %p141 = pneg %p75
        %s142 = smul.u32 16, %s20
        %p143 = scmp.lt.s32.totalorder %s19, 1
        %s144 = scalar_select %p143, %s19, 1
        %p145 = scmp.lt.s32.totalorder %s142, 31
        %s146 = scalar_select %p145, %s142, 31
        %s147 = smul.addr %s144, 32
        %s148 = sadd.s32 %s146, %s147
        %s149 = smul.addr %s148, 8
        %s150 = scalar_lea.vmem %s1, %s149
        %s151 = smul.u32 16, %s20
        %p152 = scmp.lt.s32.totalorder %s19, 1
        %s153 = scalar_select %p152, %s19, 1
        %p154 = scmp.lt.s32.totalorder %s151, 31
        %s155 = scalar_select %p154, %s151, 31
        %s156 = smul.addr %s153, 32
        %s157 = sadd.s32 %s155, %s156
        %s158 = smul.addr %s157, 8
        %s159 = scalar_lea.vmem %s1, %s158
        %s160 = smul.u32 16, %s20
        %v161 = vld [vmem:[%s128] sm:$0xf]
        %162 = vxpose.xlu0.b32.start [1/16] %v161, 128
        %163 = vxpose.xlu0.b32.cont [2/16] 0.0, 128
        %164 = vxpose.xlu0.b32.cont [3/16] 0.0, 128
        %165 = vxpose.xlu0.b32.cont [4/16] 0.0, 128
        %166 = vxpose.xlu0.b32.cont [5/16] 0.0, 128
        %167 = vxpose.xlu0.b32.cont [6/16] 0.0, 128
        %168 = vxpose.xlu0.b32.cont [7/16] 0.0, 128
        %169 = vxpose.xlu0.b32.cont [8/16] 0.0, 128
        %170 = vxpose.xlu0.b32.cont [9/16] 0.0, 128
        %171 = vxpose.xlu0.b32.cont [10/16] 0.0, 128
        %172 = vxpose.xlu0.b32.cont [11/16] 0.0, 128
        %173 = vxpose.xlu0.b32.cont [12/16] 0.0, 128
        %174 = vxpose.xlu0.b32.cont [13/16] 0.0, 128
        %175 = vxpose.xlu0.b32.cont [14/16] 0.0, 128
        %176 = vxpose.xlu0.b32.cont [15/16] 0.0, 128
        %177 = vxpose.xlu0.b32.end [16/16] 0.0, 128
        %v178 = vpop.trf.xlu0
        %v179 = vpop.trf.xlu0
        %v180 = vpop.trf.xlu0
        %v181 = vpop.trf.xlu0
        %v182 = vpop.trf.xlu0
        %v183 = vpop.trf.xlu0
        %v184 = vpop.trf.xlu0
        %v185 = vpop.trf.xlu0
        %v186 = vpop.trf.xlu0
        %v187 = vpop.trf.xlu0
        %v188 = vpop.trf.xlu0
        %v189 = vpop.trf.xlu0
        %v190 = vpop.trf.xlu0
        %v191 = vpop.trf.xlu0
        %v192 = vpop.trf.xlu0
        %v193 = vpop.trf.xlu0
        %vm194 = vcmask 31744
        %195 = vst.msk [vmem:[%s159] sm:$0xff] %vm194, %v178
        %196 = vst.msk [vmem:[%s159 + $0x8] sm:$0xff] %vm194, %v179
        %197 = vst.msk [vmem:[%s159 + $0x10] sm:$0xff] %vm194, %v180
        %198 = vst.msk [vmem:[%s159 + $0x18] sm:$0xff] %vm194, %v181
        %199 = vst.msk [vmem:[%s159 + $0x20] sm:$0xff] %vm194, %v182
        %200 = vst.msk [vmem:[%s159 + $0x28] sm:$0xff] %vm194, %v183
        %201 = vst.msk [vmem:[%s159 + $0x30] sm:$0xff] %vm194, %v184
        %202 = vst.msk [vmem:[%s159 + $0x38] sm:$0xff] %vm194, %v185
        %203 = vst.msk [vmem:[%s159 + $0x40] sm:$0xff] %vm194, %v186
        %204 = vst.msk [vmem:[%s159 + $0x48] sm:$0xff] %vm194, %v187
        %205 = vst.msk [vmem:[%s159 + $0x50] sm:$0xff] %vm194, %v188
        %206 = vst.msk [vmem:[%s159 + $0x58] sm:$0xff] %vm194, %v189
        %207 = vst.msk [vmem:[%s159 + $0x60] sm:$0xff] %vm194, %v190
        %208 = vst.msk [vmem:[%s159 + $0x68] sm:$0xff] %vm194, %v191
        %209 = vst.msk [vmem:[%s159 + $0x70] sm:$0xff] %vm194, %v192
        %210 = vst.msk [vmem:[%s159 + $0x78] sm:$0xff] %vm194, %v193
        %s211 = smul.u32 16, %s20
        %p212 = scmp.lt.s32.totalorder %s19, 1
        %s213 = scalar_select %p212, %s19, 1
        %p214 = scmp.lt.s32.totalorder %s211, 31
        %s215 = scalar_select %p214, %s211, 31
        %s216 = smul.addr %s213, 32
        %s217 = sadd.s32 %s215, %s216
        %s218 = smul.addr %s217, 8
        %s219 = scalar_lea.vmem %s1, %s218
        // Predicated region
        $region29: #{tpu_custom_call.1} parent=23 // pred_check
          %p220 = pneg %p75
        $region30: #{tpu_custom_call.1} parent=23 // pred_check_branch
          %222 = sbr.rel (%p220) target = $region32
        $region31: #{tpu_custom_call.1} parent=23 // pred_region
          %s223 = smul.u32 16, %s20
        $region32: #{tpu_custom_call.1} parent=23 // pred_fallthru
          _
      $region24: #{tpu_custom_call.1} parent=5 // pred_fallthru
        _
      %p224 = scmp.le.s32.totalorder 2, %s10
      // Predicated region
      $region33: #{tpu_custom_call.1} parent=5 // pred_check
        %p225 = pneg %p224
      $region34: #{tpu_custom_call.1} parent=5 // pred_check_branch
        %227 = sbr.rel (%p225) target = $region36
      $region35: #{tpu_custom_call.1} parent=5 // pred_region
        %s228 = ssub.s32 %s10, 2
        // Predicated region
        $region37: #{tpu_custom_call.1} parent=35 // pred_check
          %p229 = pneg %p81
        $region38: #{tpu_custom_call.1} parent=35 // pred_check_branch
          %231 = sbr.rel (%p229) target = $region40
        $region39: #{tpu_custom_call.1} parent=35 // pred_region
          %s232 = smul.u32 16, %s22
          %p233 = scmp.lt.s32.totalorder %s21, 1
          %s234 = scalar_select %p233, %s21, 1
          %p235 = scmp.lt.s32.totalorder %s232, 31
          %s236 = scalar_select %p235, %s232, 31
          %s237 = smul.addr %s234, 32
          %s238 = sadd.s32 %s236, %s237
          %s239 = smul.addr %s238, 8
          %s240 = scalar_lea.vmem %s1, %s239
        $region40: #{tpu_custom_call.1} parent=35 // pred_fallthru
          _
      $region36: #{tpu_custom_call.1} parent=5 // pred_fallthru
        _
    $region6: #{tpu_custom_call.1} parent=1 // loop_footer
      %s14 = sadd.s32 1, %s10
    $region7: #{tpu_custom_call.1} parent=1 // loop_footer_branch
      %9 = sbr.rel target = $region3
    $region8: #{tpu_custom_call.1} parent=1 // loop_exit
      _
    %241 = vsyncpa [#allocation3], 1
    %s242 = scalar_lea.sflag [#allocation3], 1
    %243 = vsyncpa %s242, 1

</llo_original>
